<compile_context>
chip_gen: v7x
topology: tpu7x:2x2x1
jax: 0.10.0
libtpu: 0.0.40
codegen_flags: <defaults>
</compile_context>

<pallas_src>
import random
from functools import partial

import jax
import jax.numpy as jnp
from jax.experimental import pallas as pl
from jax.experimental.pallas import tpu as pltpu


# -----------------------------------------------------------------------------
# Tiling helpers
# -----------------------------------------------------------------------------
_SUBLANE = 8
_LANE = 128
_MAX_TILE_NC = 64     # sublanes per block
_MAX_TILE_HW = 4096   # lanes per block  -> (64, 4096) f32 = 1 MiB / block
                      #   3 refs x 2 buffers ~ 6 MiB, safe under v5e/v7x scoped VMEM.


def _round_up(x, m):
    return (x + m - 1) // m * m


def _pick_tile(extent, align, cap):
    """extent is a multiple of `align`; return a tile size (multiple of `align`,
    <= cap) that divides `extent` so no extra padding is needed."""
    if extent <= cap:
        return extent
    for t in range(cap, 0, -align):
        if extent % t == 0:
            return t
    return align  # unreachable (align always divides extent)


def _to_padded_2d(image_nchw):
    """NCHW -> (N*C, H*W) f32 slab, padded to (mult of 8, mult of 128)."""
    n, c, h, w = image_nchw.shape
    nc, hw = n * c, h * w
    nc_p = _round_up(nc, _SUBLANE)
    hw_p = _round_up(hw, _LANE)
    img2d = image_nchw.reshape(nc, hw).astype(jnp.float32)
    if (nc_p, hw_p) != (nc, hw):
        img2d = jnp.pad(img2d, ((0, nc_p - nc), (0, hw_p - hw)))
    return img2d, (nc, hw)


# -----------------------------------------------------------------------------
# Shared elementwise kernel: out = clamp(image + noise, lo, hi)
# noise_ref is either a full (tile_nc, tile_hw) block (Gaussian) or a (1, tile_hw)
# row broadcast across sublanes on the VPU (salt & pepper).
# -----------------------------------------------------------------------------
def _add_clip_kernel(img_ref, noise_ref, out_ref, *, lo, hi):
    out_ref[...] = jnp.clip(img_ref[...] + noise_ref[...], lo, hi)


def _add_clip(img2d, noise2d, lo, hi):
    nc_p, hw_p = img2d.shape
    tile_nc = _pick_tile(nc_p, _SUBLANE, _MAX_TILE_NC)
    tile_hw = _pick_tile(hw_p, _LANE, _MAX_TILE_HW)
    grid = (nc_p // tile_nc, hw_p // tile_hw)

    if noise2d.shape[0] == nc_p:          # full-size noise (Gaussian)
        noise_block = (tile_nc, tile_hw)
        noise_map = lambda i, j: (i, j)
    else:                                 # (1, hw_p) broadcast row (salt & pepper)
        noise_block = (1, tile_hw)
        noise_map = lambda i, j: (0, j)

    return pl.pallas_call(
        partial(_add_clip_kernel, lo=float(lo), hi=float(hi)),
        out_shape=jax.ShapeDtypeStruct((nc_p, hw_p), jnp.float32),
        grid=grid,
        in_specs=[
            pl.BlockSpec((tile_nc, tile_hw), lambda i, j: (i, j)),
            pl.BlockSpec(noise_block, noise_map),
        ],
        out_specs=pl.BlockSpec((tile_nc, tile_hw), lambda i, j: (i, j)),
        compiler_params=pltpu.CompilerParams(
            dimension_semantics=("parallel", "parallel")),
    )(img2d, noise2d)


# -----------------------------------------------------------------------------
# Gaussian noise attack: out = clamp(image + (randn * std + mean), 0, 255)
# -----------------------------------------------------------------------------
@partial(jax.jit, static_argnames=("mean", "std"))
def gaussian_attack(image_nchw, key, mean=0.0, std=0.01):
    n, c, h, w = image_nchw.shape
    img2d, (nc, hw) = _to_padded_2d(image_nchw)
    noise = jax.random.normal(key, img2d.shape, jnp.float32) * std + mean
    out2d = _add_clip(img2d, noise, 0.0, 255.0)
    return out2d[:nc, :hw].reshape(n, c, h, w)


# -----------------------------------------------------------------------------
# Salt & pepper attack (matches torch reference exactly, including its naming):
#   a (H*W,) zero vector gets int(H*W*pepper_prob) random pixels set to +512 and
#   int(H*W*salt_prob) random pixels set to -512, is broadcast over (N, C),
#   added to the image and clamped to [-255, 255].
# -----------------------------------------------------------------------------
@partial(jax.jit, static_argnames=("salt_prob", "pepper_prob"))
def salt_pepper_attack(image_nchw, key, salt_prob=0.01, pepper_prob=0.01):
    n, c, h, w = image_nchw.shape
    total = h * w
    n_pepper = int(total * pepper_prob)   # first n_pepper of perm -> +512
    n_salt = int(total * salt_prob)       # last  n_salt  of perm -> -512

    perm = jax.random.permutation(key, total)
    flat = jnp.zeros((total,), jnp.float32)
    if n_pepper > 0:
        flat = flat.at[perm[:n_pepper]].set(512.0)
    if n_salt > 0:
        flat = flat.at[perm[total - n_salt:]].set(-512.0)

    hw_p = _round_up(total, _LANE)
    noise_row = jnp.pad(flat, (0, hw_p - total)).reshape(1, hw_p)

    img2d, (nc, hw) = _to_padded_2d(image_nchw)
    out2d = _add_clip(img2d, noise_row, -255.0, 255.0)
    return out2d[:nc, :hw].reshape(n, c, h, w)


# -----------------------------------------------------------------------------
# MultiAttack: branch selection done with a host RNG (mirrors torch.rand(1).item())
# so no device->host sync stalls the pipeline.
# -----------------------------------------------------------------------------
class MultiAttack:
    def __init__(self, gaussian_prob=0.5, salt_pepper_prob=0.5, jpeg_prob=0.0,
                 quality=50, salt_prob=0.01, pepper_prob=0.01, mean=0.0, std=0.01):
        assert gaussian_prob + salt_pepper_prob + jpeg_prob <= 1, \
            "Probabilities must sum to 1 or less"
        self.gaussian_prob = gaussian_prob
        self.salt_pepper_prob = salt_pepper_prob
        self.jpeg_prob = jpeg_prob
        self.total_prob = gaussian_prob + salt_pepper_prob + jpeg_prob
        self.range2 = gaussian_prob + salt_pepper_prob
        self.salt_prob = salt_prob
        self.pepper_prob = pepper_prob
        self.mean = float(mean)
        self.std = float(std)
        self.quality = quality

    def forward(self, image_nchw, key):
        r = random.random()   # host-side branch choice == torch.rand(1).item()
        if r < self.gaussian_prob / self.total_prob:
            return gaussian_attack(image_nchw, key, mean=self.mean, std=self.std)
        elif r < self.range2 / self.total_prob:
            return salt_pepper_attack(image_nchw, key,
                                      salt_prob=self.salt_prob,
                                      pepper_prob=self.pepper_prob)
        else:
            # TODO(synk): JPEG compression (PIL encode/decode round-trip) has no Pallas
            # equivalent; with default jpeg_prob=0 this branch is unreachable.
            raise NotImplementedError("JPEG compression attack is not implemented on TPU")


if __name__ == "__main__":
    random.seed(0)
    key = jax.random.PRNGKey(0)
    k_img, k_fwd, k_g, k_sp = jax.random.split(key, 4)

    # Small NCHW image consistent with the module: batch=2, channels=4, 16x16 spatial.
    image = jax.random.uniform(k_img, (2, 4, 16, 16), jnp.float32) * 255.0

    attack = MultiAttack()  # defaults: gaussian_prob=0.5, salt_pepper_prob=0.5, jpeg_prob=0

    # Module forward (random branch selection, as in torch).
    out = attack.forward(image, k_fwd)
    out = jax.block_until_ready(out)
    assert out.shape == image.shape and out.dtype == jnp.float32

    # Exercise both Pallas paths explicitly.
    out_g = gaussian_attack(image, k_g, mean=0.0, std=0.01)
    out_sp = salt_pepper_attack(image, k_sp, salt_prob=0.01, pepper_prob=0.01)
    jax.block_until_ready((out_g, out_sp))
    assert out_g.shape == image.shape and out_sp.shape == image.shape
    assert 0.0 <= float(jnp.min(out_g)) and float(jnp.max(out_g)) <= 255.0
    assert -255.0 <= float(jnp.min(out_sp)) and float(jnp.max(out_sp)) <= 255.0
    # std=0.01 noise perturbs each pixel by well under half an intensity step.
    assert float(jnp.max(jnp.abs(out_g - jnp.clip(image, 0.0, 255.0)))) < 0.5

    # Pure-JAX reference for the salt & pepper branch (same key -> same permutation).
    h, w = image.shape[2], image.shape[3]
    total = h * w
    n_pp = int(total * 0.01)
    perm = jax.random.permutation(k_sp, total)
    flat = jnp.zeros((total,), jnp.float32)
    flat = flat.at[perm[:n_pp]].set(512.0)
    flat = flat.at[perm[total - n_pp:]].set(-512.0)
    ref_sp = jnp.clip(image + flat.reshape(1, 1, h, w), -255.0, 255.0)
    assert bool(jnp.allclose(out_sp, ref_sp, atol=1e-5))

    # Also exercise the padding path with unaligned (N*C, H*W) = (6, 100).
    image2 = jax.random.uniform(jax.random.PRNGKey(1), (2, 3, 10, 10), jnp.float32) * 255.0
    out2 = gaussian_attack(image2, jax.random.PRNGKey(2))
    out3 = salt_pepper_attack(image2, jax.random.PRNGKey(3))
    jax.block_until_ready((out2, out3))
    assert out2.shape == image2.shape and out3.shape == image2.shape

    print("KERNEL_OK")
</pallas_src>

<mosaic_0001>
module attributes {stable_mosaic.version = 11 : i64} {
  func.func @_add_clip_kernel(%arg0: i32, %arg1: i32, %arg2: memref<8x256xf32, #tpu.memory_space<vmem>>, %arg3: memref<1x256xf32, #tpu.memory_space<vmem>>, %arg4: memref<8x256xf32, #tpu.memory_space<vmem>>) attributes {dimension_semantics = [#tpu.dimension_semantics<parallel>, #tpu.dimension_semantics<parallel>], iteration_bounds = array<i64: 1, 1>, scalar_prefetch = 0 : i64, scratch_operands = 0 : i64, tpu.core_type = #tpu.core_type<tc>, window_params = [{transform_indices = @transform_0, window_bounds = array<i64: 8, 256>}, {transform_indices = @transform_1, window_bounds = array<i64: 1, 256>}, {transform_indices = @transform_2, window_bounds = array<i64: 8, 256>}]} {
    %c0 = arith.constant 0 : index
    %c0_0 = arith.constant 0 : index
    %0 = vector.load %arg2[%c0, %c0_0] : memref<8x256xf32, #tpu.memory_space<vmem>>, vector<8x256xf32>
    %c0_1 = arith.constant 0 : index
    %c0_2 = arith.constant 0 : index
    %1 = vector.load %arg3[%c0_1, %c0_2] : memref<1x256xf32, #tpu.memory_space<vmem>>, vector<1x256xf32>
    %2 = vector.broadcast %1 : vector<1x256xf32> to vector<8x256xf32>
    %3 = arith.addf %0, %2 : vector<8x256xf32>
    %cst = arith.constant -2.550000e+02 : f32
    %cst_3 = arith.constant 2.550000e+02 : f32
    %4 = vector.broadcast %cst : f32 to vector<8x256xf32>
    %5 = arith.maximumf %4, %3 : vector<8x256xf32>
    %6 = vector.broadcast %cst_3 : f32 to vector<8x256xf32>
    %7 = arith.minimumf %6, %5 : vector<8x256xf32>
    %c0_4 = arith.constant 0 : index
    %c0_5 = arith.constant 0 : index
    %8 = vector.load %arg4[%c0_4, %c0_5] : memref<8x256xf32, #tpu.memory_space<vmem>>, vector<8x256xf32>
    tpu.vector_store %arg4[%c0_4, %c0_5], %7 {strides = array<i32>} : memref<8x256xf32, #tpu.memory_space<vmem>>, vector<8x256xf32>,
    return
  }
  func.func @transform_0(%arg0: i32, %arg1: i32) -> (i32, i32) {
    %c0_i32 = arith.constant 0 : i32
    return %arg0, %arg1 : i32, i32
  }
  func.func @transform_1(%arg0: i32, %arg1: i32) -> (i32, i32) {
    %c0_i32 = arith.constant 0 : i32
    %c0_i32_0 = arith.constant 0 : i32
    return %c0_i32, %arg1 : i32, i32
  }
  func.func @transform_2(%arg0: i32, %arg1: i32) -> (i32, i32) {
    %c0_i32 = arith.constant 0 : i32
    return %arg0, %arg1 : i32, i32
  }
}

</mosaic_0001>

<llo_original>
// kernel: salt_pepper_attack.1
$region0: #{salt_pepper_attack.1}
  #allocation0 [shape = 'u32[]', space=smem, size = 0x4, offset = 0x4, fixed_abs, tag = 'smem constant byte address 0x4 - core index']
  #allocation1 [shape = 'u32[144,128]{1,0:T(1,128)}', space=vmem, size = 0x12000, scoped, tag = 'internal scratch']
  %s0 = inlined_call_operand.vmem [shape: f32[8,256], index: 0, kind: input, shape index: {}]
  %s1 = inlined_call_operand.vmem [shape: f32[1,256], index: 1, kind: input, shape index: {}]
  %s2 = inlined_call_operand.vmem [shape: f32[8,256], index: 2, kind: output, shape index: {}]
  %s3 = sld [smem:[#allocation0]]
  $region18: #{salt_pepper_attack.1} parent=0
    _
  %s5 = ssub.s32 1, %s3
  %s6 = scalar_select 0, %s5, %s3
  // Predicated region
  $region2: #{salt_pepper_attack.1} parent=0 // pred_check
    _
  $region3: #{salt_pepper_attack.1} parent=0 // pred_check_branch
    %8 = sbr.rel (0) target = $region5
  $region4: #{salt_pepper_attack.1} parent=0 // pred_region
    _
  $region5: #{salt_pepper_attack.1} parent=0 // pred_fallthru
    _
  // Predicated region
  $region6: #{salt_pepper_attack.1} parent=0 // pred_check
    _
  $region7: #{salt_pepper_attack.1} parent=0 // pred_check_branch
    %10 = sbr.rel (0) target = $region9
  $region8: #{salt_pepper_attack.1} parent=0 // pred_region
    _
  $region9: #{salt_pepper_attack.1} parent=0 // pred_fallthru
    _
  %v11 = vld [vmem:[%s0] sm:$0xff]
  %v12 = vld [vmem:[%s0 + $0x8] sm:$0xff]
  %v13 = vld [vmem:[%s1] sm:$0x3]
  %v15 = vlaneseq
  %v16 = vshrl.u32 %v15, 7
  %v17 = vsub.s32 0, %v16
  %v18 = vrot.slane %v13, %v17
  %v19 = vlaneseq
  %v20 = vshrl.u32 %v19, 7
  %v21 = vsub.s32 1, %v20
  %v22 = vrot.slane %v13, %v21
  %v25 = vadd.f32 %v11, %v18
  %v26 = vadd.f32 %v12, %v22
  %v27 = vmax.f32 %v25, -255.0
  %v28 = vmax.f32 %v26, -255.0
  %v29 = vmin.f32 %v27, 255.0
  %v30 = vmin.f32 %v28, 255.0
  %31 = vst [vmem:[%s2] sm:$0xff] %v29
  %32 = vst [vmem:[%s2 + $0x8] sm:$0xff] %v30
  // Predicated region
  $region10: #{salt_pepper_attack.1} parent=0 // pred_check
    _
  $region11: #{salt_pepper_attack.1} parent=0 // pred_check_branch
    %34 = sbr.rel (0) target = $region13
  $region12: #{salt_pepper_attack.1} parent=0 // pred_region
    _
  $region13: #{salt_pepper_attack.1} parent=0 // pred_fallthru
    _
  // Predicated region
  $region14: #{salt_pepper_attack.1} parent=0 // pred_check
    _
  $region15: #{salt_pepper_attack.1} parent=0 // pred_check_branch
    %36 = sbr.rel (0) target = $region17
  $region16: #{salt_pepper_attack.1} parent=0 // pred_region
    _
  $region17: #{salt_pepper_attack.1} parent=0 // pred_fallthru
    _

</llo_original>
